<compile_context>
chip_gen: v6e
topology: v6e:2x2x1
jax: 0.10.0
libtpu: 0.0.40
codegen_flags: <defaults>
</compile_context>

<pallas_src>
import functools

import jax
import jax.numpy as jnp
from jax.experimental import pallas as pl
from jax.experimental.pallas import tpu as pltpu

LANE = 128


def _round_up(n, m):
    return ((n + m - 1) // m) * m


# ----------------------------------------------------------------------------
# Fused multi-layer SAGEConv kernel
#   per layer i:
#     agg   = (A_i @ H_src) * deg_inv_i          (mean aggregation, f32 scale)
#     h_cat = concat([agg, H_src[:n_dst]], -1)   (bf16)
#     out   = h_cat @ Wcat_i + b_i               (single MXU matmul, f32 acc)
#     out   = relu(out) and stash in VMEM scratch, unless last layer.
# ----------------------------------------------------------------------------
def _make_fused_kernel(n_dsts, num_layers):
    def kernel(*refs):
        x_ref = refs[0]
        layer_refs = refs[1:1 + 4 * num_layers]
        o_ref = refs[1 + 4 * num_layers]
        scratches = refs[2 + 4 * num_layers:]

        h_ref = x_ref
        for i in range(num_layers):
            a_ref, dinv_ref, w_ref, b_ref = layer_refs[4 * i:4 * i + 4]
            n_dst = n_dsts[i]

            h_src = h_ref[...]                                    # bf16
            agg = jnp.dot(a_ref[...], h_src,
                          preferred_element_type=jnp.float32)     # f32
            agg = agg * dinv_ref[...]                             # mean (VPU)

            h_cat = jnp.concatenate(
                [agg.astype(jnp.bfloat16), h_src[:n_dst, :]], axis=-1)
            out = jnp.dot(h_cat, w_ref[...],
                          preferred_element_type=jnp.float32)
            out = out + b_ref[...]                                # f32 epilogue

            if i != num_layers - 1:
                out = jnp.maximum(out, 0.0)
                scratches[i][...] = out.astype(jnp.bfloat16)
                h_ref = scratches[i]
            else:
                o_ref[...] = out.astype(o_ref.dtype)

    return kernel


def _full_spec(shape):
    return pl.BlockSpec(shape, lambda i, _n=len(shape): (0,) * _n)


# ----------------------------------------------------------------------------
# Plain-JAX glue
# ----------------------------------------------------------------------------
def build_counts_deginv(edge_index, size):
    """Dense neighbor-count matrix (integer valued) and f32 1/deg vector."""
    n_src, n_dst = int(size[0]), int(size[1])
    src, dst = edge_index[0], edge_index[1]
    counts = jnp.zeros((n_dst, n_src), jnp.float32).at[dst, src].add(1.0)
    deg = counts.sum(axis=1, keepdims=True)
    deg_inv = 1.0 / jnp.maximum(deg, 1.0)
    return counts, deg_inv


def init_sage_params(key, in_dim, out_dim):
    """Deterministic init for one SAGEConv: lin_l (W,b) and lin_r (W)."""
    k1, k2, k3 = jax.random.split(key, 3)
    scale = 1.0 / jnp.sqrt(jnp.float32(in_dim))
    wl = jax.random.uniform(k1, (out_dim, in_dim), jnp.float32, -scale, scale)
    wr = jax.random.uniform(k2, (out_dim, in_dim), jnp.float32, -scale, scale)
    b = jax.random.uniform(k3, (out_dim,), jnp.float32, -scale, scale)
    return {"wlT": wl.T, "wrT": wr.T, "b": b}


def graphsage_forward(x, adjs, params, num_layers):
    """Mirrors GraphSAGE.forward(h, adjs) with one fused pallas_call."""
    assert len(adjs) == num_layers == len(params)

    f_in0 = x.shape[1]
    f_pad_prev = _round_up(f_in0, LANE)
    x_pad = jnp.pad(x, ((0, 0), (0, f_pad_prev - f_in0))).astype(jnp.bfloat16)

    inputs = [x_pad]
    in_specs = [_full_spec(x_pad.shape)]
    scratch_shapes = []
    n_dsts = []
    f_out_last = None
    f_out_pad_last = None

    for i, (edge_index, size) in enumerate(adjs):
        n_src, n_dst = int(size[0]), int(size[1])
        p = params[i]
        f_in, f_out = p["wlT"].shape
        f_in_pad = _round_up(f_in, LANE)
        f_out_pad = _round_up(f_out, LANE)
        assert f_in_pad == f_pad_prev, "layer input width mismatch"

        counts, deg_inv = build_counts_deginv(edge_index, size)

        wl_pad = jnp.zeros((f_in_pad, f_out_pad), jnp.float32)
        wl_pad = wl_pad.at[:f_in, :f_out].set(p["wlT"])
        wr_pad = jnp.zeros((f_in_pad, f_out_pad), jnp.float32)
        wr_pad = wr_pad.at[:f_in, :f_out].set(p["wrT"])
        w_cat = jnp.concatenate([wl_pad, wr_pad], axis=0).astype(jnp.bfloat16)

        b_pad = jnp.zeros((1, f_out_pad), jnp.float32)
        b_pad = b_pad.at[0, :f_out].set(p["b"])

        layer_inputs = [counts.astype(jnp.bfloat16), deg_inv, w_cat, b_pad]
        inputs += layer_inputs
        in_specs += [_full_spec(a.shape) for a in layer_inputs]

        n_dsts.append(n_dst)
        if i != num_layers - 1:
            scratch_shapes.append(pltpu.VMEM((n_dst, f_out_pad), jnp.bfloat16))

        f_pad_prev = f_out_pad
        f_out_last, f_out_pad_last = f_out, f_out_pad

    out_n = n_dsts[-1]
    kernel = _make_fused_kernel(tuple(n_dsts), num_layers)

    out_pad = pl.pallas_call(
        kernel,
        out_shape=jax.ShapeDtypeStruct((out_n, f_out_pad_last), jnp.float32),
        grid=(1,),
        in_specs=in_specs,
        out_specs=_full_spec((out_n, f_out_pad_last)),
        scratch_shapes=scratch_shapes,
        compiler_params=pltpu.CompilerParams(
            dimension_semantics=("arbitrary",)),
    )(*inputs)

    return out_pad[:, :f_out_last]
    # TODO(synk): GraphSAGE.inference() depends on an external test_loader; not reproduced here.


# ----------------------------------------------------------------------------
# Pure-JAX f32 reference (for a loose sanity check against bf16 kernel).
# ----------------------------------------------------------------------------
def graphsage_forward_ref(x, adjs, params, num_layers):
    h = x
    for i, (edge_index, size) in enumerate(adjs):
        counts, deg_inv = build_counts_deginv(edge_index, size)
        A = counts * deg_inv
        h_dst = h[: int(size[1])]
        p = params[i]
        h = (A @ h) @ p["wlT"] + h_dst @ p["wrT"] + p["b"][None, :]
        if i != num_layers - 1:
            h = jnp.maximum(h, 0.0)
    return h


if __name__ == "__main__":
    key = jax.random.PRNGKey(0)

    # Small synthetic problem consistent with the module's forward():
    in_dim, hidden_dim, num_classes, num_layers = 16, 32, 8, 2
    n0, n1, n2 = 64, 32, 16            # sampled node counts per hop
    e0, e1 = 256, 128                  # edges per bipartite adj

    k_feat, k_e0s, k_e0d, k_e1s, k_e1d, k_p0, k_p1 = jax.random.split(key, 7)

    # Input node features for all sampled nodes (layer-0 sources).
    x = jax.random.normal(k_feat, (n0, in_dim), jnp.float32)

    # adjs: list of (edge_index, size) per layer; edge_index[0]=src, [1]=dst.
    ei0 = jnp.stack([
        jax.random.randint(k_e0s, (e0,), 0, n0),
        jax.random.randint(k_e0d, (e0,), 0, n1),
    ])
    ei1 = jnp.stack([
        jax.random.randint(k_e1s, (e1,), 0, n1),
        jax.random.randint(k_e1d, (e1,), 0, n2),
    ])
    adjs = [(ei0, (n0, n1)), (ei1, (n1, n2))]

    # Deterministic parameters: layers = [in->hidden, hidden->classes].
    params = [
        init_sage_params(k_p0, in_dim, hidden_dim),
        init_sage_params(k_p1, hidden_dim, num_classes),
    ]

    out = graphsage_forward(x, adjs, params, num_layers)
    out = jax.block_until_ready(out)
    assert out.shape == (n2, num_classes), out.shape

    ref = graphsage_forward_ref(x, adjs, params, num_layers)
    ref = jax.block_until_ready(ref)
    assert jnp.all(jnp.isfinite(out))
    # Loose tolerance: kernel uses bf16 MXU inputs with f32 accumulation.
    assert jnp.allclose(out, ref, rtol=1e-1, atol=1e-1), (
        float(jnp.max(jnp.abs(out - ref))))

    print("KERNEL_OK")
</pallas_src>

<mosaic_0001>
module attributes {stable_mosaic.version = 11 : i64} {
  func.func @kernel(%arg0: i32, %arg1: memref<64x128xbf16, #tpu.memory_space<vmem>>, %arg2: memref<32x64xbf16, #tpu.memory_space<vmem>>, %arg3: memref<32x1xf32, #tpu.memory_space<vmem>>, %arg4: memref<256x128xbf16, #tpu.memory_space<vmem>>, %arg5: memref<1x128xf32, #tpu.memory_space<vmem>>, %arg6: memref<16x32xbf16, #tpu.memory_space<vmem>>, %arg7: memref<16x1xf32, #tpu.memory_space<vmem>>, %arg8: memref<256x128xbf16, #tpu.memory_space<vmem>>, %arg9: memref<1x128xf32, #tpu.memory_space<vmem>>, %arg10: memref<16x128xf32, #tpu.memory_space<vmem>>, %arg11: memref<32x128xbf16, #tpu.memory_space<vmem>>) attributes {dimension_semantics = [#tpu.dimension_semantics<arbitrary>], iteration_bounds = array<i64: 1>, scalar_prefetch = 0 : i64, scratch_operands = 1 : i64, tpu.core_type = #tpu.core_type<tc>, window_params = [{pipeline_mode = #tpu.pipeline_mode<synchronous>, transform_indices = @transform_0, window_bounds = array<i64: 64, 128>}, {pipeline_mode = #tpu.pipeline_mode<synchronous>, transform_indices = @transform_1, window_bounds = array<i64: 32, 64>}, {pipeline_mode = #tpu.pipeline_mode<synchronous>, transform_indices = @transform_2, window_bounds = array<i64: 32, 1>}, {pipeline_mode = #tpu.pipeline_mode<synchronous>, transform_indices = @transform_3, window_bounds = array<i64: 256, 128>}, {pipeline_mode = #tpu.pipeline_mode<synchronous>, transform_indices = @transform_4, window_bounds = array<i64: 1, 128>}, {pipeline_mode = #tpu.pipeline_mode<synchronous>, transform_indices = @transform_5, window_bounds = array<i64: 16, 32>}, {pipeline_mode = #tpu.pipeline_mode<synchronous>, transform_indices = @transform_6, window_bounds = array<i64: 16, 1>}, {pipeline_mode = #tpu.pipeline_mode<synchronous>, transform_indices = @transform_7, window_bounds = array<i64: 256, 128>}, {pipeline_mode = #tpu.pipeline_mode<synchronous>, transform_indices = @transform_8, window_bounds = array<i64: 1, 128>}, {pipeline_mode = #tpu.pipeline_mode<synchronous>, transform_indices = @transform_9, window_bounds = array<i64: 16, 128>}]} {
    %c0 = arith.constant 0 : index
    %c0_0 = arith.constant 0 : index
    %0 = vector.load %arg1[%c0, %c0_0] : memref<64x128xbf16, #tpu.memory_space<vmem>>, vector<64x128xbf16>
    %c0_1 = arith.constant 0 : index
    %c0_2 = arith.constant 0 : index
    %1 = vector.load %arg2[%c0_1, %c0_2] : memref<32x64xbf16, #tpu.memory_space<vmem>>, vector<32x64xbf16>
    %cst = arith.constant dense<0.000000e+00> : vector<32x128xf32>
    %2 = tpu.matmul %1, %0, %cst {dimension_numbers = #tpu.dot_dimension_numbers<[1], [0], [0], [1], [0, 0, 1, 1], [], []>} : vector<32x64xbf16>, vector<64x128xbf16>, vector<32x128xf32> -> vector<32x128xf32>
    %c0_3 = arith.constant 0 : index
    %c0_4 = arith.constant 0 : index
    %3 = vector.load %arg3[%c0_3, %c0_4] : memref<32x1xf32, #tpu.memory_space<vmem>>, vector<32x1xf32>
    %4 = vector.broadcast %3 : vector<32x1xf32> to vector<32x128xf32>
    %5 = arith.mulf %2, %4 : vector<32x128xf32>
    %6 = arith.truncf %5 : vector<32x128xf32> to vector<32x128xbf16>
    %7 = vector.extract_strided_slice %0 {offsets = [0, 0], sizes = [32, 128], strides = [1, 1]} : vector<64x128xbf16> to vector<32x128xbf16>
    %8 = tpu.concatenate %6, %7 in 1 : vector<32x128xbf16>, vector<32x128xbf16> -> vector<32x256xbf16>
    %c0_5 = arith.constant 0 : index
    %c0_6 = arith.constant 0 : index
    %9 = vector.load %arg4[%c0_5, %c0_6] : memref<256x128xbf16, #tpu.memory_space<vmem>>, vector<256x128xbf16>
    %cst_7 = arith.constant dense<0.000000e+00> : vector<32x128xf32>
    %10 = tpu.matmul %8, %9, %cst_7 {dimension_numbers = #tpu.dot_dimension_numbers<[1], [0], [0], [1], [0, 0, 1, 1], [], []>} : vector<32x256xbf16>, vector<256x128xbf16>, vector<32x128xf32> -> vector<32x128xf32>
    %c0_8 = arith.constant 0 : index
    %c0_9 = arith.constant 0 : index
    %11 = vector.load %arg5[%c0_8, %c0_9] : memref<1x128xf32, #tpu.memory_space<vmem>>, vector<1x128xf32>
    %12 = vector.broadcast %11 : vector<1x128xf32> to vector<32x128xf32>
    %13 = arith.addf %10, %12 : vector<32x128xf32>
    %cst_10 = arith.constant 0.000000e+00 : f32
    %14 = vector.broadcast %cst_10 : f32 to vector<32x128xf32>
    %15 = arith.maximumf %13, %14 : vector<32x128xf32>
    %16 = arith.truncf %15 : vector<32x128xf32> to vector<32x128xbf16>
    %c0_11 = arith.constant 0 : index
    %c0_12 = arith.constant 0 : index
    %17 = vector.load %arg11[%c0_11, %c0_12] : memref<32x128xbf16, #tpu.memory_space<vmem>>, vector<32x128xbf16>
    tpu.vector_store %arg11[%c0_11, %c0_12], %16 {strides = array<i32>} : memref<32x128xbf16, #tpu.memory_space<vmem>>, vector<32x128xbf16>,
    %c0_13 = arith.constant 0 : index
    %c0_14 = arith.constant 0 : index
    %18 = vector.load %arg11[%c0_13, %c0_14] : memref<32x128xbf16, #tpu.memory_space<vmem>>, vector<32x128xbf16>
    %c0_15 = arith.constant 0 : index
    %c0_16 = arith.constant 0 : index
    %19 = vector.load %arg6[%c0_15, %c0_16] : memref<16x32xbf16, #tpu.memory_space<vmem>>, vector<16x32xbf16>
    %cst_17 = arith.constant dense<0.000000e+00> : vector<16x128xf32>
    %20 = tpu.matmul %19, %18, %cst_17 {dimension_numbers = #tpu.dot_dimension_numbers<[1], [0], [0], [1], [0, 0, 1, 1], [], []>} : vector<16x32xbf16>, vector<32x128xbf16>, vector<16x128xf32> -> vector<16x128xf32>
    %c0_18 = arith.constant 0 : index
    %c0_19 = arith.constant 0 : index
    %21 = vector.load %arg7[%c0_18, %c0_19] : memref<16x1xf32, #tpu.memory_space<vmem>>, vector<16x1xf32>
    %22 = vector.broadcast %21 : vector<16x1xf32> to vector<16x128xf32>
    %23 = arith.mulf %20, %22 : vector<16x128xf32>
    %24 = arith.truncf %23 : vector<16x128xf32> to vector<16x128xbf16>
    %25 = vector.extract_strided_slice %18 {offsets = [0, 0], sizes = [16, 128], strides = [1, 1]} : vector<32x128xbf16> to vector<16x128xbf16>
    %26 = tpu.concatenate %24, %25 in 1 : vector<16x128xbf16>, vector<16x128xbf16> -> vector<16x256xbf16>
    %c0_20 = arith.constant 0 : index
    %c0_21 = arith.constant 0 : index
    %27 = vector.load %arg8[%c0_20, %c0_21] : memref<256x128xbf16, #tpu.memory_space<vmem>>, vector<256x128xbf16>
    %cst_22 = arith.constant dense<0.000000e+00> : vector<16x128xf32>
    %28 = tpu.matmul %26, %27, %cst_22 {dimension_numbers = #tpu.dot_dimension_numbers<[1], [0], [0], [1], [0, 0, 1, 1], [], []>} : vector<16x256xbf16>, vector<256x128xbf16>, vector<16x128xf32> -> vector<16x128xf32>
    %c0_23 = arith.constant 0 : index
    %c0_24 = arith.constant 0 : index
    %29 = vector.load %arg9[%c0_23, %c0_24] : memref<1x128xf32, #tpu.memory_space<vmem>>, vector<1x128xf32>
    %30 = vector.broadcast %29 : vector<1x128xf32> to vector<16x128xf32>
    %31 = arith.addf %28, %30 : vector<16x128xf32>
    %c0_25 = arith.constant 0 : index
    %c0_26 = arith.constant 0 : index
    %32 = vector.load %arg10[%c0_25, %c0_26] : memref<16x128xf32, #tpu.memory_space<vmem>>, vector<16x128xf32>
    tpu.vector_store %arg10[%c0_25, %c0_26], %31 {strides = array<i32>} : memref<16x128xf32, #tpu.memory_space<vmem>>, vector<16x128xf32>,
    return
  }
  func.func @transform_0(%arg0: i32) -> (i32, i32) {
    %c0_i32 = arith.constant 0 : i32
    %c0_i32_0 = arith.constant 0 : i32
    %c0_i32_1 = arith.constant 0 : i32
    return %c0_i32, %c0_i32_0 : i32, i32
  }
  func.func @transform_1(%arg0: i32) -> (i32, i32) {
    %c0_i32 = arith.constant 0 : i32
    %c0_i32_0 = arith.constant 0 : i32
    %c0_i32_1 = arith.constant 0 : i32
    return %c0_i32, %c0_i32_0 : i32, i32
  }
  func.func @transform_2(%arg0: i32) -> (i32, i32) {
    %c0_i32 = arith.constant 0 : i32
    %c0_i32_0 = arith.constant 0 : i32
    %c0_i32_1 = arith.constant 0 : i32
    return %c0_i32, %c0_i32_0 : i32, i32
  }
  func.func @transform_3(%arg0: i32) -> (i32, i32) {
    %c0_i32 = arith.constant 0 : i32
    %c0_i32_0 = arith.constant 0 : i32
    %c0_i32_1 = arith.constant 0 : i32
    return %c0_i32, %c0_i32_0 : i32, i32
  }
  func.func @transform_4(%arg0: i32) -> (i32, i32) {
    %c0_i32 = arith.constant 0 : i32
    %c0_i32_0 = arith.constant 0 : i32
    %c0_i32_1 = arith.constant 0 : i32
    return %c0_i32, %c0_i32_0 : i32, i32
  }
  func.func @transform_5(%arg0: i32) -> (i32, i32) {
    %c0_i32 = arith.constant 0 : i32
    %c0_i32_0 = arith.constant 0 : i32
    %c0_i32_1 = arith.constant 0 : i32
    return %c0_i32, %c0_i32_0 : i32, i32
  }
  func.func @transform_6(%arg0: i32) -> (i32, i32) {
    %c0_i32 = arith.constant 0 : i32
    %c0_i32_0 = arith.constant 0 : i32
    %c0_i32_1 = arith.constant 0 : i32
    return %c0_i32, %c0_i32_0 : i32, i32
  }
  func.func @transform_7(%arg0: i32) -> (i32, i32) {
    %c0_i32 = arith.constant 0 : i32
    %c0_i32_0 = arith.constant 0 : i32
    %c0_i32_1 = arith.constant 0 : i32
    return %c0_i32, %c0_i32_0 : i32, i32
  }
  func.func @transform_8(%arg0: i32) -> (i32, i32) {
    %c0_i32 = arith.constant 0 : i32
    %c0_i32_0 = arith.constant 0 : i32
    %c0_i32_1 = arith.constant 0 : i32
    return %c0_i32, %c0_i32_0 : i32, i32
  }
  func.func @transform_9(%arg0: i32) -> (i32, i32) {
    %c0_i32 = arith.constant 0 : i32
    %c0_i32_0 = arith.constant 0 : i32
    %c0_i32_1 = arith.constant 0 : i32
    return %c0_i32, %c0_i32_0 : i32, i32
  }
}

</mosaic_0001>

<llo_original>
// kernel: tpu_custom_call.1
$region0: #{tpu_custom_call.1}
  #allocation0 [shape = 'u32[]', space=smem, size = 0x4, offset = 0x4, fixed_abs, tag = 'smem constant byte address 0x4 - core index']
  #allocation1 [shape = 'u32[144,128]{1,0:T(1,128)}', space=vmem, size = 0x12000, scoped, tag = 'internal scratch']
  #allocation2 [shape = 'bf16[32,128]{1,0:T(8,128)(2,1)}', space=vmem, size = 0x2000, scoped, tag = 'scratch operand']
  %s0 = inlined_call_operand.vmem [shape: bf16[64,128], index: 0, kind: input, shape index: {}]
  %s1 = inlined_call_operand.vmem [shape: bf16[32,64], index: 1, kind: input, shape index: {}]
  %s2 = inlined_call_operand.vmem [shape: f32[32,1], index: 2, kind: input, shape index: {}]
  %s3 = inlined_call_operand.hbm [shape: bf16[256,128], index: 3, kind: input, shape index: {}]
  %s4 = inlined_call_operand.vmem [shape: f32[1,128], index: 4, kind: input, shape index: {}]
  %s5 = inlined_call_operand.vmem [shape: bf16[16,32], index: 5, kind: input, shape index: {}]
  %s6 = inlined_call_operand.vmem [shape: f32[16,1], index: 6, kind: input, shape index: {}]
  %s7 = inlined_call_operand.hbm [shape: bf16[256,128], index: 7, kind: input, shape index: {}]
  %s8 = inlined_call_operand.vmem [shape: f32[1,128], index: 8, kind: input, shape index: {}]
  %s9 = inlined_call_operand.hbm [shape: f32[16,128], index: 9, kind: output, shape index: {}]
  %s10 = sld [smem:[#allocation0]]
  $region54: #{tpu_custom_call.1} parent=0
    _
  %s12 = ssub.s32 1, %s10
  %s13 = scalar_select 0, %s12, %s10
  $region1: #{tpu_custom_call.1} parent=0
    #allocation3 [shape = 'u8[65536]{0}', space=vmem, size = 0x10000, scoped, tag = 'input window, operand 3, single buffered']
    #allocation4 [shape = 's32[1]{0}', space=sflag, size = 0x4, scoped, tag = 'scoped memory for tpu_custom_call.1']
    #allocation5 [shape = 's32[1]{0}', space=sflag, size = 0x4, scoped, tag = 'scoped memory for tpu_custom_call.1']
    #allocation6 [shape = 'u8[65536]{0}', space=vmem, size = 0x10000, scoped, tag = 'input window, operand 7, single buffered']
    #allocation7 [shape = 's32[1]{0}', space=sflag, size = 0x4, scoped, tag = 'scoped memory for tpu_custom_call.1']
    #allocation8 [shape = 'u8[8192]{0}', space=vmem, size = 0x2000, scoped, tag = 'output window, operand 0, single buffered']
    %14 = vsyncpa [#allocation4], 0
    %15 = vsyncpa [#allocation7], 0
    %16 = vsyncpa [#allocation5], 0
    // Predicated region
    $region2: #{tpu_custom_call.1} parent=1 // pred_check
      _
    $region3: #{tpu_custom_call.1} parent=1 // pred_check_branch
      %18 = sbr.rel (0) target = $region5
    $region4: #{tpu_custom_call.1} parent=1 // pred_region
      _
    $region5: #{tpu_custom_call.1} parent=1 // pred_fallthru
      _
    // Predicated region
    $region6: #{tpu_custom_call.1} parent=1 // pred_check
      _
    $region7: #{tpu_custom_call.1} parent=1 // pred_check_branch
      %20 = sbr.rel (0) target = $region9
    $region8: #{tpu_custom_call.1} parent=1 // pred_region
      _
    $region9: #{tpu_custom_call.1} parent=1 // pred_fallthru
      _
    // Predicated region
    $region10: #{tpu_custom_call.1} parent=1 // pred_check
      _
    $region11: #{tpu_custom_call.1} parent=1 // pred_check_branch
      %22 = sbr.rel (0) target = $region13
    $region12: #{tpu_custom_call.1} parent=1 // pred_region
      _
    $region13: #{tpu_custom_call.1} parent=1 // pred_fallthru
      _
    // Predicated region
    $region14: #{tpu_custom_call.1} parent=1 // pred_check
      _
    $region15: #{tpu_custom_call.1} parent=1 // pred_check_branch
      %24 = sbr.rel (0) target = $region17
    $region16: #{tpu_custom_call.1} parent=1 // pred_region
      %s26 = ssub.s32 2048, 2048
      %27 = vsyncadd [#allocation4], %s26
      %s28 = sshll.u32 [#allocation3], 4
      %s29 = int_to_ptr.vmem [resolvable:$true] %s28
      %34 = dma.hbm_to_vmem [thread:$0]  %s3, 2048, %s29, [#allocation4], 64, 64, 4
    $region17: #{tpu_custom_call.1} parent=1 // pred_fallthru
      _
    // Predicated region
    $region18: #{tpu_custom_call.1} parent=1 // pred_check
      _
    $region19: #{tpu_custom_call.1} parent=1 // pred_check_branch
      %36 = sbr.rel (0) target = $region21
    $region20: #{tpu_custom_call.1} parent=1 // pred_region
      _
    $region21: #{tpu_custom_call.1} parent=1 // pred_fallthru
      _
    // Predicated region
    $region22: #{tpu_custom_call.1} parent=1 // pred_check
      _
    $region23: #{tpu_custom_call.1} parent=1 // pred_check_branch
      %38 = sbr.rel (0) target = $region25
    $region24: #{tpu_custom_call.1} parent=1 // pred_region
      _
    $region25: #{tpu_custom_call.1} parent=1 // pred_fallthru
      _
    // Predicated region
    $region26: #{tpu_custom_call.1} parent=1 // pred_check
      _
    $region27: #{tpu_custom_call.1} parent=1 // pred_check_branch
      %40 = sbr.rel (0) target = $region29
    $region28: #{tpu_custom_call.1} parent=1 // pred_region
      _
    $region29: #{tpu_custom_call.1} parent=1 // pred_fallthru
      _
    // Predicated region
    $region30: #{tpu_custom_call.1} parent=1 // pred_check
      _
    $region31: #{tpu_custom_call.1} parent=1 // pred_check_branch
      %42 = sbr.rel (0) target = $region33
    $region32: #{tpu_custom_call.1} parent=1 // pred_region
      %s44 = ssub.s32 2048, 2048
      %45 = vsyncadd [#allocation7], %s44
      %s46 = sshll.u32 [#allocation6], 4
      %s47 = int_to_ptr.vmem [resolvable:$true] %s46
      %52 = dma.hbm_to_vmem [thread:$0]  %s7, 2048, %s47, [#allocation7], 64, 64, 4
    $region33: #{tpu_custom_call.1} parent=1 // pred_fallthru
      _
    // Predicated region
    $region34: #{tpu_custom_call.1} parent=1 // pred_check
      _
    $region35: #{tpu_custom_call.1} parent=1 // pred_check_branch
      %54 = sbr.rel (0) target = $region37
    $region36: #{tpu_custom_call.1} parent=1 // pred_region
      _
    $region37: #{tpu_custom_call.1} parent=1 // pred_fallthru
      _
    // Predicated region
    $region38: #{tpu_custom_call.1} parent=1 // pred_check
      _
    $region39: #{tpu_custom_call.1} parent=1 // pred_check_branch
      %56 = sbr.rel (0) target = $region41
    $region40: #{tpu_custom_call.1} parent=1 // pred_region
      %57 = dma.done [#allocation4], 2048
    $region41: #{tpu_custom_call.1} parent=1 // pred_fallthru
      _
    // Predicated region
    $region42: #{tpu_custom_call.1} parent=1 // pred_check
      _
    $region43: #{tpu_custom_call.1} parent=1 // pred_check_branch
      %59 = sbr.rel (0) target = $region45
    $region44: #{tpu_custom_call.1} parent=1 // pred_region
      %60 = dma.done [#allocation7], 2048
    $region45: #{tpu_custom_call.1} parent=1 // pred_fallthru
      _
    %v62 = vld [vmem:[%s0] sm:$0xf]
    %v63 = vld [vmem:[%s0 + $0x4] sm:$0xf]
    %v64 = vld [vmem:[%s0 + $0x8] sm:$0xf]
    %v65 = vld [vmem:[%s0 + $0xc] sm:$0xf]
    %v66 = vld [vmem:[%s0 + $0x10] sm:$0xf]
    %v67 = vld [vmem:[%s0 + $0x14] sm:$0xf]
    %v68 = vld [vmem:[%s0 + $0x18] sm:$0xf]
    %v69 = vld [vmem:[%s0 + $0x1c] sm:$0xf]
    %v70 = vld [vmem:[%s1] sm:$0xf]
    %v71 = vld [vmem:[%s1 + $0x4] sm:$0xf]
    %v72 = vld [vmem:[%s1 + $0x8] sm:$0xf]
    %v73 = vld [vmem:[%s1 + $0xc] sm:$0xf]
    %v78 = vunpack.c.l.b16 %v70
    %v79 = vunpack.c.l.b16 %v71
    %v80 = vunpack.c.l.b16 %v72
    %v81 = vunpack.c.l.b16 %v73
    %v82 = vpack.c.b16 %v79, %v78
    %v83 = vpack.c.b16 %v81, %v80
    %v92 = vunpack.c.l.b16 %v62
    %v93 = vunpack.c.l.b16 %v63
    %v94 = vunpack.c.l.b16 %v64
    %v95 = vunpack.c.l.b16 %v65
    %v96 = vunpack.c.l.b16 %v66
    %v97 = vunpack.c.l.b16 %v67
    %v98 = vunpack.c.l.b16 %v68
    %v99 = vunpack.c.l.b16 %v69
    %v100 = vpack.c.b16 %v93, %v92
    %v101 = vpack.c.b16 %v95, %v94
    %v102 = vpack.c.b16 %v97, %v96
    %v103 = vpack.c.b16 %v99, %v98
    %vm108 = vcmask 523264
    %v110 = vsel %vm108, %v82, 0
    %v113 = vsel %vm108, %v83, 0
    %115 = vmatprep.subr.bf16.mxu0 0
    %116 = vmatpush1.bf16.msra.mxu0 0
    %117 = vmatprep.subr.bf16.mxu0 0
    %118 = vmatpush1.bf16.msra.mxu0 0
    %119 = vmatprep.subr.bf16.mxu0 0
    %120 = vmatpush1.bf16.msra.mxu0 0
    %121 = vmatprep.subr.bf16.mxu0 0
    %122 = vmatpush1.bf16.msra.mxu0 0
    %123 = vmatprep.subr.bf16.mxu0 0
    %124 = vmatpush1.bf16.msra.mxu0 %v103
    %125 = vmatprep.subr.bf16.mxu0 0
    %126 = vmatpush1.bf16.msra.mxu0 %v102
    %127 = vmatprep.subr.bf16.mxu0 0
    %128 = vmatpush1.bf16.msra.mxu0 %v101
    %129 = vmatprep.subr.bf16.mxu0 0
    %130 = vmatpush1.bf16.msra.mxu0 %v100
    %131 = vmatprep.subr.bf16.mxu0 0
    %132 = vmatpush2.bf16.msra.mxu0 0
    %133 = vmatprep.subr.bf16.mxu0 0
    %134 = vmatpush2.bf16.msra.mxu0 0
    %135 = vmatprep.subr.bf16.mxu0 0
    %136 = vmatpush2.bf16.msra.mxu0 0
    %137 = vmatprep.subr.bf16.mxu0 0
    %138 = vmatpush2.bf16.msra.mxu0 0
    %139 = vmatprep.subr.bf16.mxu0 0
    %140 = vmatpush2.bf16.msra.mxu0 0
    %141 = vmatprep.subr.bf16.mxu0 0
    %142 = vmatpush2.bf16.msra.mxu0 0
    %143 = vmatprep.subr.bf16.mxu0 0
    %144 = vmatpush2.bf16.msra.mxu0 0
    %145 = vmatprep.subr.bf16.mxu0 0
    %146 = vmatpush2.bf16.msra.mxu0 0
    %147 = vmatprep.mubr.bf16.mxu0 0
    %148 = vmatmul.mubr.bf16.gmra.mxu0 %v110
    %v149 = vpop.f32.mrf.mxu0
    %v150 = vadd.f32 0.0, %v149
    %v151 = vpop.f32.mrf.mxu0
    %v152 = vpop.f32.mrf.mxu0
    %v153 = vadd.f32 0.0, %v152
    %v154 = vpop.f32.mrf.mxu0
    %155 = vmatprep.mubr.bf16.mxu0 0
    %156 = vmatmul.mubr.bf16.gmra.mxu0 %v113
    %v157 = vpop.f32.mrf.mxu0
    %v158 = vadd.f32 0.0, %v157
    %v159 = vpop.f32.mrf.mxu0
    %v160 = vpop.f32.mrf.mxu0
    %v161 = vadd.f32 0.0, %v160
    %v162 = vpop.f32.mrf.mxu0
    %163 = vdwg.mxu0
    %v164 = vld [vmem:[%s2] sm:$0xff]
    %v165 = vld [vmem:[%s2 + $0x8] sm:$0xff]
    %v166 = vld [vmem:[%s2 + $0x10] sm:$0xff]
    %v167 = vld [vmem:[%s2 + $0x18] sm:$0xff]
    %169 = vset.pattern.permute.xlu0 0
    %170 = vperm.xlu0 %169, %v164
    %v171 = vpop.permute.xlu0 %170
    %174 = vset.pattern.permute.xlu0 0
    %175 = vperm.xlu0 %174, %v165
    %v176 = vpop.permute.xlu0 %175
    %179 = vset.pattern.permute.xlu0 0
    %180 = vperm.xlu0 %179, %v166
    %v181 = vpop.permute.xlu0 %180
    %184 = vset.pattern.permute.xlu0 0
    %185 = vperm.xlu0 %184, %v167
    %v186 = vpop.permute.xlu0 %185
    %v188 = vmul.f32 %v150, %v171
    %v189 = vmul.f32 %v153, %v176
    %v190 = vmul.f32 %v158, %v181
    %v191 = vmul.f32 %v161, %v186
    %v192 = vpack.c.bf16 %v189, %v188
    %v193 = vpack.c.bf16 %v191, %v190
    %v194 = vld [vmem:[#allocation3] sm:$0xf]
    %v195 = vld [vmem:[#allocation3 + $0x4] sm:$0xf]
    %v196 = vld [vmem:[#allocation3 + $0x8] sm:$0xf]
    %v197 = vld [vmem:[#allocation3 + $0xc] sm:$0xf]
    %v198 = vld [vmem:[#allocation3 + $0x10] sm:$0xf]
    %v199 = vld [vmem:[#allocation3 + $0x14] sm:$0xf]
    %v200 = vld [vmem:[#allocation3 + $0x18] sm:$0xf]
    %v201 = vld [vmem:[#allocation3 + $0x1c] sm:$0xf]
    %v202 = vld [vmem:[#allocation3 + $0x20] sm:$0xf]
    %v203 = vld [vmem:[#allocation3 + $0x24] sm:$0xf]
    %v204 = vld [vmem:[#allocation3 + $0x28] sm:$0xf]
    %v205 = vld [vmem:[#allocation3 + $0x2c] sm:$0xf]
    %v206 = vld [vmem:[#allocation3 + $0x30] sm:$0xf]
    %v207 = vld [vmem:[#allocation3 + $0x34] sm:$0xf]
    %v208 = vld [vmem:[#allocation3 + $0x38] sm:$0xf]
    %v209 = vld [vmem:[#allocation3 + $0x3c] sm:$0xf]
    %v210 = vld [vmem:[#allocation3 + $0x40] sm:$0xf]
    %v211 = vld [vmem:[#allocation3 + $0x44] sm:$0xf]
    %v212 = vld [vmem:[#allocation3 + $0x48] sm:$0xf]
    %v213 = vld [vmem:[#allocation3 + $0x4c] sm:$0xf]
    %v214 = vld [vmem:[#allocation3 + $0x50] sm:$0xf]
    %v215 = vld [vmem:[#allocation3 + $0x54] sm:$0xf]
    %v216 = vld [vmem:[#allocation3 + $0x58] sm:$0xf]
    %v217 = vld [vmem:[#allocation3 + $0x5c] sm:$0xf]
    %v218 = vld [vmem:[#allocation3 + $0x60] sm:$0xf]
    %v219 = vld [vmem:[#allocation3 + $0x64] sm:$0xf]
    %v220 = vld [vmem:[#allocation3 + $0x68] sm:$0xf]
    %v221 = vld [vmem:[#allocation3 + $0x6c] sm:$0xf]
    %v222 = vld [vmem:[#allocation3 + $0x70] sm:$0xf]
    %v223 = vld [vmem:[#allocation3 + $0x74] sm:$0xf]
    %v224 = vld [vmem:[#allocation3 + $0x78] sm:$0xf]
    %v225 = vld [vmem:[#allocation3 + $0x7c] sm:$0xf]
    %v226 = vld [vmem:[%s4] sm:$0x1]
    %v228 = vlaneseq
    %v229 = vshrl.u32 %v228, 7
    %v230 = vsub.s32 0, %v229
    %v231 = vrot.slane %v226, %v230
    %v265 = vunpack.c.l.b16 %v194
    %v266 = vunpack.c.l.b16 %v195
    %v267 = vunpack.c.l.b16 %v196
    %v268 = vunpack.c.l.b16 %v197
    %v269 = vunpack.c.l.b16 %v198
    %v270 = vunpack.c.l.b16 %v199
    %v271 = vunpack.c.l.b16 %v200
    %v272 = vunpack.c.l.b16 %v201
    %v273 = vunpack.c.l.b16 %v202
    %v274 = vunpack.c.l.b16 %v203
    %v275 = vunpack.c.l.b16 %v204
    %v276 = vunpack.c.l.b16 %v205
    %v277 = vunpack.c.l.b16 %v206
    %v278 = vunpack.c.l.b16 %v207
    %v279 = vunpack.c.l.b16 %v208
    %v280 = vunpack.c.l.b16 %v209
    %v281 = vunpack.c.l.b16 %v210
    %v282 = vunpack.c.l.b16 %v211
    %v283 = vunpack.c.l.b16 %v212
    %v284 = vunpack.c.l.b16 %v213
    %v285 = vunpack.c.l.b16 %v214
    %v286 = vunpack.c.l.b16 %v215
    %v287 = vunpack.c.l.b16 %v216
    %v288 = vunpack.c.l.b16 %v217
    %v289 = vunpack.c.l.b16 %v218
    %v290 = vunpack.c.l.b16 %v219
    %v291 = vunpack.c.l.b16 %v220
    %v292 = vunpack.c.l.b16 %v221
    %v293 = vunpack.c.l.b16 %v222
    %v294 = vunpack.c.l.b16 %v223
    %v295 = vunpack.c.l.b16 %v224
    %v296 = vunpack.c.l.b16 %v225
    %v297 = vpack.c.b16 %v266, %v265
    %v298 = vpack.c.b16 %v268, %v267
    %v299 = vpack.c.b16 %v270, %v269
    %v300 = vpack.c.b16 %v272, %v271
    %v301 = vpack.c.b16 %v274, %v273
    %v302 = vpack.c.b16 %v276, %v275
    %v303 = vpack.c.b16 %v278, %v277
    %v304 = vpack.c.b16 %v280, %v279
    %v305 = vpack.c.b16 %v282, %v281
    %v306 = vpack.c.b16 %v284, %v283
    %v307 = vpack.c.b16 %v286, %v285
    %v308 = vpack.c.b16 %v288, %v287
    %v309 = vpack.c.b16 %v290, %v289
    %v310 = vpack.c.b16 %v292, %v291
    %v311 = vpack.c.b16 %v294, %v293
    %v312 = vpack.c.b16 %v296, %v295
    %329 = vmatprep.subr.bf16.mxu0 0
    %330 = vmatpush1.bf16.msra.mxu0 %v304
    %331 = vmatprep.subr.bf16.mxu0 0
    %332 = vmatpush1.bf16.msra.mxu0 %v303
    %333 = vmatprep.subr.bf16.mxu0 0
    %334 = vmatpush1.bf16.msra.mxu0 %v302
    %335 = vmatprep.subr.bf16.mxu0 0
    %336 = vmatpush1.bf16.msra.mxu0 %v301
    %337 = vmatprep.subr.bf16.mxu0 0
    %338 = vmatpush1.bf16.msra.mxu0 %v300
    %339 = vmatprep.subr.bf16.mxu0 0
    %340 = vmatpush1.bf16.msra.mxu0 %v299
    %341 = vmatprep.subr.bf16.mxu0 0
    %342 = vmatpush1.bf16.msra.mxu0 %v298
    %343 = vmatprep.subr.bf16.mxu0 0
    %344 = vmatpush1.bf16.msra.mxu0 %v297
    %345 = vmatprep.subr.bf16.mxu0 0
    %346 = vmatpush2.bf16.msra.mxu0 %v312
    %347 = vmatprep.subr.bf16.mxu0 0
    %348 = vmatpush2.bf16.msra.mxu0 %v311
    %349 = vmatprep.subr.bf16.mxu0 0
    %350 = vmatpush2.bf16.msra.mxu0 %v310
    %351 = vmatprep.subr.bf16.mxu0 0
    %352 = vmatpush2.bf16.msra.mxu0 %v309
    %353 = vmatprep.subr.bf16.mxu0 0
    %354 = vmatpush2.bf16.msra.mxu0 %v308
    %355 = vmatprep.subr.bf16.mxu0 0
    %356 = vmatpush2.bf16.msra.mxu0 %v307
    %357 = vmatprep.subr.bf16.mxu0 0
    %358 = vmatpush2.bf16.msra.mxu0 %v306
    %359 = vmatprep.subr.bf16.mxu0 0
    %360 = vmatpush2.bf16.msra.mxu0 %v305
    %361 = vmatprep.mubr.bf16.mxu0 %v100
    %362 = vmatmul.mubr.bf16.gmra.mxu0 %v192
    %v363 = vpop.f32.mrf.mxu0
    %v364 = vadd.f32 %v231, %v363
    %v365 = vpop.f32.mrf.mxu0
    %v366 = vpop.f32.mrf.mxu0
    %v367 = vadd.f32 %v231, %v366
    %v368 = vpop.f32.mrf.mxu0
    %369 = vmatprep.mubr.bf16.mxu0 %v101
    %370 = vmatmul.mubr.bf16.gmra.mxu0 %v193
    %v371 = vpop.f32.mrf.mxu0
    %v372 = vadd.f32 %v231, %v371
    %v373 = vpop.f32.mrf.mxu0
    %v374 = vpop.f32.mrf.mxu0
    %v375 = vadd.f32 %v231, %v374
    %v376 = vpop.f32.mrf.mxu0
    %377 = vdwg.mxu0
    %v378 = vmax.f32 %v364, 0.0
    %v379 = vmax.f32 %v367, 0.0
    %v380 = vmax.f32 %v372, 0.0
    %v381 = vmax.f32 %v375, 0.0
    %v382 = vpack.c.bf16 %v379, %v378
    %v383 = vpack.c.bf16 %v381, %v380
    %v386 = vunpack.c.l.b16 %v382
    %v387 = vunpack.c.h.b16 %v382
    %v388 = vunpack.c.l.b16 %v383
    %v389 = vunpack.c.h.b16 %v383
    %v390 = vpack.c.b16 %v386, %v386
    %v391 = vpack.c.b16 %v387, %v387
    %v392 = vpack.c.b16 %v388, %v388
    %v393 = vpack.c.b16 %v389, %v389
    %398 = vst [vmem:[#allocation2] sm:$0xf] %v390
    %399 = vst [vmem:[#allocation2 + $0x4] sm:$0xf] %v391
    %400 = vst [vmem:[#allocation2 + $0x8] sm:$0xf] %v392
    %401 = vst [vmem:[#allocation2 + $0xc] sm:$0xf] %v393
    %v402 = vld [vmem:[#allocation2] sm:$0xf]
    %v403 = vld [vmem:[#allocation2 + $0x4] sm:$0xf]
    %v404 = vld [vmem:[#allocation2 + $0x8] sm:$0xf]
    %v405 = vld [vmem:[#allocation2 + $0xc] sm:$0xf]
    %v406 = vld [vmem:[%s5] sm:$0xf]
    %v407 = vld [vmem:[%s5 + $0x4] sm:$0xf]
    %v410 = vunpack.c.l.b16 %v406
    %v411 = vunpack.c.l.b16 %v407
    %v412 = vpack.c.b16 %v411, %v410
    %v417 = vunpack.c.l.b16 %v402
    %v418 = vunpack.c.l.b16 %v403
    %v419 = vunpack.c.l.b16 %v404
    %v420 = vunpack.c.l.b16 %v405
    %v421 = vpack.c.b16 %v418, %v417
    %v422 = vpack.c.b16 %v420, %v419
    %vm425 = vcmask 261120
    %v427 = vsel %vm425, %v412, 0
    %429 = vmatprep.subr.bf16.mxu0 0
    %430 = vmatpush1.bf16.msra.mxu0 0
    %431 = vmatprep.subr.bf16.mxu0 0
    %432 = vmatpush1.bf16.msra.mxu0 0
    %433 = vmatprep.subr.bf16.mxu0 0
    %434 = vmatpush1.bf16.msra.mxu0 0
    %435 = vmatprep.subr.bf16.mxu0 0
    %436 = vmatpush1.bf16.msra.mxu0 0
    %437 = vmatprep.subr.bf16.mxu0 0
    %438 = vmatpush1.bf16.msra.mxu0 0
    %439 = vmatprep.subr.bf16.mxu0 0
    %440 = vmatpush1.bf16.msra.mxu0 0
    %441 = vmatprep.subr.bf16.mxu0 0
    %442 = vmatpush1.bf16.msra.mxu0 %v422
    %443 = vmatprep.subr.bf16.mxu0 0
    %444 = vmatpush1.bf16.msra.mxu0 %v421
    %445 = vmatprep.subr.bf16.mxu0 0
    %446 = vmatpush2.bf16.msra.mxu0 0
    %447 = vmatprep.subr.bf16.mxu0 0
    %448 = vmatpush2.bf16.msra.mxu0 0
    %449 = vmatprep.subr.bf16.mxu0 0
    %450 = vmatpush2.bf16.msra.mxu0 0
    %451 = vmatprep.subr.bf16.mxu0 0
    %452 = vmatpush2.bf16.msra.mxu0 0
    %453 = vmatprep.subr.bf16.mxu0 0
    %454 = vmatpush2.bf16.msra.mxu0 0
    %455 = vmatprep.subr.bf16.mxu0 0
    %456 = vmatpush2.bf16.msra.mxu0 0
    %457 = vmatprep.subr.bf16.mxu0 0
    %458 = vmatpush2.bf16.msra.mxu0 0
    %459 = vmatprep.subr.bf16.mxu0 0
    %460 = vmatpush2.bf16.msra.mxu0 0
    %461 = vmatprep.mubr.bf16.mxu0 0
    %462 = vmatmul.mubr.bf16.gmra.mxu0 %v427
    %v463 = vpop.f32.mrf.mxu0
    %v464 = vadd.f32 0.0, %v463
    %v465 = vpop.f32.mrf.mxu0
    %v466 = vpop.f32.mrf.mxu0
    %v467 = vadd.f32 0.0, %v466
    %v468 = vpop.f32.mrf.mxu0
    %469 = vdwg.mxu0
    %v470 = vld [vmem:[%s6] sm:$0xff]
    %v471 = vld [vmem:[%s6 + $0x8] sm:$0xff]
    %473 = vset.pattern.permute.xlu0 0
    %474 = vperm.xlu0 %473, %v470
    %v475 = vpop.permute.xlu0 %474
    %478 = vset.pattern.permute.xlu0 0
    %479 = vperm.xlu0 %478, %v471
    %v480 = vpop.permute.xlu0 %479
    %v482 = vmul.f32 %v464, %v475
    %v483 = vmul.f32 %v467, %v480
    %v484 = vpack.c.bf16 %v483, %v482
    %v485 = vld [vmem:[#allocation6] sm:$0xf]
    %v486 = vld [vmem:[#allocation6 + $0x4] sm:$0xf]
    %v487 = vld [vmem:[#allocation6 + $0x8] sm:$0xf]
    %v488 = vld [vmem:[#allocation6 + $0xc] sm:$0xf]
    %v489 = vld [vmem:[#allocation6 + $0x10] sm:$0xf]
    %v490 = vld [vmem:[#allocation6 + $0x14] sm:$0xf]
    %v491 = vld [vmem:[#allocation6 + $0x18] sm:$0xf]
    %v492 = vld [vmem:[#allocation6 + $0x1c] sm:$0xf]
    %v493 = vld [vmem:[#allocation6 + $0x20] sm:$0xf]
    %v494 = vld [vmem:[#allocation6 + $0x24] sm:$0xf]
    %v495 = vld [vmem:[#allocation6 + $0x28] sm:$0xf]
    %v496 = vld [vmem:[#allocation6 + $0x2c] sm:$0xf]
    %v497 = vld [vmem:[#allocation6 + $0x30] sm:$0xf]
    %v498 = vld [vmem:[#allocation6 + $0x34] sm:$0xf]
    %v499 = vld [vmem:[#allocation6 + $0x38] sm:$0xf]
    %v500 = vld [vmem:[#allocation6 + $0x3c] sm:$0xf]
    %v501 = vld [vmem:[#allocation6 + $0x40] sm:$0xf]
    %v502 = vld [vmem:[#allocation6 + $0x44] sm:$0xf]
    %v503 = vld [vmem:[#allocation6 + $0x48] sm:$0xf]
    %v504 = vld [vmem:[#allocation6 + $0x4c] sm:$0xf]
    %v505 = vld [vmem:[#allocation6 + $0x50] sm:$0xf]
    %v506 = vld [vmem:[#allocation6 + $0x54] sm:$0xf]
    %v507 = vld [vmem:[#allocation6 + $0x58] sm:$0xf]
    %v508 = vld [vmem:[#allocation6 + $0x5c] sm:$0xf]
    %v509 = vld [vmem:[#allocation6 + $0x60] sm:$0xf]
    %v510 = vld [vmem:[#allocation6 + $0x64] sm:$0xf]
    %v511 = vld [vmem:[#allocation6 + $0x68] sm:$0xf]
    %v512 = vld [vmem:[#allocation6 + $0x6c] sm:$0xf]
    %v513 = vld [vmem:[#allocation6 + $0x70] sm:$0xf]
    %v514 = vld [vmem:[#allocation6 + $0x74] sm:$0xf]
    %v515 = vld [vmem:[#allocation6 + $0x78] sm:$0xf]
    %v516 = vld [vmem:[#allocation6 + $0x7c] sm:$0xf]
    %v517 = vld [vmem:[%s8] sm:$0x1]
    %v519 = vlaneseq
    %v520 = vshrl.u32 %v519, 7
    %v521 = vsub.s32 0, %v520
    %v522 = vrot.slane %v517, %v521
    %v556 = vunpack.c.l.b16 %v485
    %v557 = vunpack.c.l.b16 %v486
    %v558 = vunpack.c.l.b16 %v487
    %v559 = vunpack.c.l.b16 %v488
    %v560 = vunpack.c.l.b16 %v489
    %v561 = vunpack.c.l.b16 %v490
    %v562 = vunpack.c.l.b16 %v491
    %v563 = vunpack.c.l.b16 %v492
    %v564 = vunpack.c.l.b16 %v493
    %v565 = vunpack.c.l.b16 %v494
    %v566 = vunpack.c.l.b16 %v495
    %v567 = vunpack.c.l.b16 %v496
    %v568 = vunpack.c.l.b16 %v497
    %v569 = vunpack.c.l.b16 %v498
    %v570 = vunpack.c.l.b16 %v499
    %v571 = vunpack.c.l.b16 %v500
    %v572 = vunpack.c.l.b16 %v501
    %v573 = vunpack.c.l.b16 %v502
    %v574 = vunpack.c.l.b16 %v503
    %v575 = vunpack.c.l.b16 %v504
    %v576 = vunpack.c.l.b16 %v505
    %v577 = vunpack.c.l.b16 %v506
    %v578 = vunpack.c.l.b16 %v507
    %v579 = vunpack.c.l.b16 %v508
    %v580 = vunpack.c.l.b16 %v509
    %v581 = vunpack.c.l.b16 %v510
    %v582 = vunpack.c.l.b16 %v511
    %v583 = vunpack.c.l.b16 %v512
    %v584 = vunpack.c.l.b16 %v513
    %v585 = vunpack.c.l.b16 %v514
    %v586 = vunpack.c.l.b16 %v515
    %v587 = vunpack.c.l.b16 %v516
    %v588 = vpack.c.b16 %v557, %v556
    %v589 = vpack.c.b16 %v559, %v558
    %v590 = vpack.c.b16 %v561, %v560
    %v591 = vpack.c.b16 %v563, %v562
    %v592 = vpack.c.b16 %v565, %v564
    %v593 = vpack.c.b16 %v567, %v566
    %v594 = vpack.c.b16 %v569, %v568
    %v595 = vpack.c.b16 %v571, %v570
    %v596 = vpack.c.b16 %v573, %v572
    %v597 = vpack.c.b16 %v575, %v574
    %v598 = vpack.c.b16 %v577, %v576
    %v599 = vpack.c.b16 %v579, %v578
    %v600 = vpack.c.b16 %v581, %v580
    %v601 = vpack.c.b16 %v583, %v582
    %v602 = vpack.c.b16 %v585, %v584
    %v603 = vpack.c.b16 %v587, %v586
    %620 = vmatprep.subr.bf16.mxu0 0
    %621 = vmatpush1.bf16.msra.mxu0 %v595
    %622 = vmatprep.subr.bf16.mxu0 0
    %623 = vmatpush1.bf16.msra.mxu0 %v594
    %624 = vmatprep.subr.bf16.mxu0 0
    %625 = vmatpush1.bf16.msra.mxu0 %v593
    %626 = vmatprep.subr.bf16.mxu0 0
    %627 = vmatpush1.bf16.msra.mxu0 %v592
    %628 = vmatprep.subr.bf16.mxu0 0
    %629 = vmatpush1.bf16.msra.mxu0 %v591
    %630 = vmatprep.subr.bf16.mxu0 0
    %631 = vmatpush1.bf16.msra.mxu0 %v590
    %632 = vmatprep.subr.bf16.mxu0 0
    %633 = vmatpush1.bf16.msra.mxu0 %v589
    %634 = vmatprep.subr.bf16.mxu0 0
    %635 = vmatpush1.bf16.msra.mxu0 %v588
    %636 = vmatprep.subr.bf16.mxu0 0
    %637 = vmatpush2.bf16.msra.mxu0 %v603
    %638 = vmatprep.subr.bf16.mxu0 0
    %639 = vmatpush2.bf16.msra.mxu0 %v602
    %640 = vmatprep.subr.bf16.mxu0 0
    %641 = vmatpush2.bf16.msra.mxu0 %v601
    %642 = vmatprep.subr.bf16.mxu0 0
    %643 = vmatpush2.bf16.msra.mxu0 %v600
    %644 = vmatprep.subr.bf16.mxu0 0
    %645 = vmatpush2.bf16.msra.mxu0 %v599
    %646 = vmatprep.subr.bf16.mxu0 0
    %647 = vmatpush2.bf16.msra.mxu0 %v598
    %648 = vmatprep.subr.bf16.mxu0 0
    %649 = vmatpush2.bf16.msra.mxu0 %v597
    %650 = vmatprep.subr.bf16.mxu0 0
    %651 = vmatpush2.bf16.msra.mxu0 %v596
    %652 = vmatprep.mubr.bf16.mxu0 %v421
    %653 = vmatmul.mubr.bf16.gmra.mxu0 %v484
    %v654 = vpop.f32.mrf.mxu0
    %v655 = vadd.f32 %v522, %v654
    %v656 = vpop.f32.mrf.mxu0
    %v657 = vpop.f32.mrf.mxu0
    %v658 = vadd.f32 %v522, %v657
    %v659 = vpop.f32.mrf.mxu0
    %660 = vdwg.mxu0
    %661 = vst [vmem:[#allocation8] sm:$0xff] %v655
    %662 = vst [vmem:[#allocation8 + $0x8] sm:$0xff] %v658
    // Predicated region
    $region46: #{tpu_custom_call.1} parent=1 // pred_check
      _
    $region47: #{tpu_custom_call.1} parent=1 // pred_check_branch
      %664 = sbr.rel (0) target = $region49
    $region48: #{tpu_custom_call.1} parent=1 // pred_region
      %s666 = ssub.s32 256, 256
      %667 = vsyncadd [#allocation5], %s666
      %s668 = sshll.u32 [#allocation8], 4
      %s669 = int_to_ptr.vmem [resolvable:$true] %s668
      %674 = dma.vmem_to_hbm [thread:$0]  %s669, 256, %s9, [#allocation5], 128, 128, 8
    $region49: #{tpu_custom_call.1} parent=1 // pred_fallthru
      _
    // Predicated region
    $region50: #{tpu_custom_call.1} parent=1 // pred_check
      _
    $region51: #{tpu_custom_call.1} parent=1 // pred_check_branch
      %676 = sbr.rel (0) target = $region53
    $region52: #{tpu_custom_call.1} parent=1 // pred_region
      %677 = dma.done [#allocation5], 256
    $region53: #{tpu_custom_call.1} parent=1 // pred_fallthru
      _
    %678 = vsyncpa [#allocation4], 1
    %679 = vsyncpa [#allocation7], 1
    %680 = vsyncpa [#allocation5], 1

</llo_original>
